<compile_context>
chip_gen: v5e
topology: v5e:2x2
jax: 0.10.0
libtpu: 0.0.40
codegen_flags: <defaults>
</compile_context>

<pallas_src>
import functools

import jax
import jax.numpy as jnp
import numpy as np
from jax import lax
from jax.experimental import pallas as pl
from jax.experimental.pallas import tpu as pltpu

_BIG = 1e30  # plain Python float -> stays a literal, never a captured jaxpr constant


def _chamfer_kernel(xlen_ref, ylen_ref, x_ref, y_ref, dx_ref, dy_ref, *, nb, tp2, norm):
    """Processes `nb` batch elements per grid step.

    x_ref : (nb, P1, D)   VMEM  (point-major; x coords read as (P1,1) sublane columns)
    y_ref : (nb, D, P2p)  VMEM  (lane-dense; y coords read as (1,tp2) lane rows)
    dx_ref: (nb, P1, 1)   VMEM  min_j d(x_i, y_j)  (0 on padded x rows)
    dy_ref: (nb, P2p)     VMEM  min_i d(x_i, y_j)  (0 on padded y cols), lane-dense rows
    xlen_ref / ylen_ref: (N_pad,) int32 scalar-prefetch (SMEM)
    """
    n0 = pl.program_id(0)
    P1 = x_ref.shape[1]
    D = x_ref.shape[2]
    P2p = y_ref.shape[2]
    n_chunks = P2p // tp2

    for b in range(nb):  # static unroll, nb <= 8
        x_len = xlen_ref[n0 * nb + b]
        y_len = ylen_ref[n0 * nb + b]

        # x coordinates as sublane columns, hoisted out of the P2 chunk loop.
        x_cols = [x_ref[b, :, k:k + 1] for k in range(D)]            # D x (P1, 1)

        row_ids = lax.broadcasted_iota(jnp.int32, (P1, 1), 0)
        row_valid = row_ids < x_len                                   # (P1, 1) bool

        run_min = jnp.full((P1, 1), _BIG, dtype=jnp.float32)          # running min over chunks

        for c in range(n_chunks):  # static unroll over P2 chunks
            c0 = c * tp2
            y_rows = y_ref[b, :, c0:c0 + tp2]                         # (D, tp2)
            col_ids = lax.broadcasted_iota(jnp.int32, (1, tp2), 1) + c0
            col_valid = col_ids < y_len                               # (1, tp2) bool

            # Direct VPU expansion of the squared (or L1) distance tile.
            d = jnp.zeros((P1, tp2), dtype=jnp.float32)
            for k in range(D):
                diff = x_cols[k] - y_rows[k:k + 1, :]                 # (P1, tp2)
                d = d + (diff * diff if norm == 2 else jnp.abs(diff))

            # x -> nearest y: running min across chunks (mask padded y columns).
            run_min = jnp.minimum(
                run_min,
                jnp.min(jnp.where(col_valid, d, _BIG), axis=1, keepdims=True))

            # y (this chunk) -> nearest x (mask padded x rows); 0 for padded/empty cases.
            cham_y = jnp.min(jnp.where(row_valid, d, _BIG), axis=0, keepdims=True)
            cham_y = jnp.where(jnp.logical_and(col_valid, x_len > 0), cham_y, 0.0)
            dy_ref[b:b + 1, c0:c0 + tp2] = cham_y

        cham_x = jnp.where(jnp.logical_and(row_valid, y_len > 0), run_min, 0.0)
        dx_ref[b, :, :] = cham_x


def chamfer_loss(x, y, x_lengths=None, y_lengths=None, *,
                 batch_reduction="mean", point_reduction="mean",
                 norm=2, single_directional=False,
                 batch_block=8, p2_chunk=512):
    """Matches ChamferLoss.forward for the no-normals / no-weights path."""
    if norm not in (1, 2):
        raise ValueError(f"norm={norm!r} not in {{1, 2}}")
    N, P1, D = x.shape
    N2, P2, D2 = y.shape
    if N2 != N or D2 != D:
        raise ValueError("y does not have the correct shape.")

    if x_lengths is None:
        x_lengths = jnp.full((N,), P1, dtype=jnp.int32)
    if y_lengths is None:
        y_lengths = jnp.full((N,), P2, dtype=jnp.int32)
    x_lengths = x_lengths.astype(jnp.int32)
    y_lengths = y_lengths.astype(jnp.int32)

    # Batch packing: nb batch elements per grid step (amortize per-step overhead).
    nb = N if N <= batch_block else batch_block
    n_pad = ((N + nb - 1) // nb) * nb

    # P2 chunking: bounded (P1, tp2) live tile inside the kernel.
    tp2 = P2 if P2 <= p2_chunk else p2_chunk
    p2_pad = ((P2 + tp2 - 1) // tp2) * tp2

    xf = x.astype(jnp.float32)                                    # (N, P1, D) point-major
    yf = jnp.transpose(y.astype(jnp.float32), (0, 2, 1))          # (N, D, P2) lane-dense

    xl_p, yl_p = x_lengths, y_lengths
    if n_pad != N:
        xf = jnp.pad(xf, ((0, n_pad - N), (0, 0), (0, 0)))
        yf = jnp.pad(yf, ((0, n_pad - N), (0, 0), (0, 0)))
        xl_p = jnp.pad(xl_p, (0, n_pad - N))                      # padded batches: length 0
        yl_p = jnp.pad(yl_p, (0, n_pad - N))
    if p2_pad != P2:
        yf = jnp.pad(yf, ((0, 0), (0, 0), (0, p2_pad - P2)))      # padded cols masked via y_len

    kernel = functools.partial(_chamfer_kernel, nb=nb, tp2=tp2, norm=norm)

    dx, dy = pl.pallas_call(
        kernel,
        out_shape=(jax.ShapeDtypeStruct((n_pad, P1, 1), jnp.float32),
                   jax.ShapeDtypeStruct((n_pad, p2_pad), jnp.float32)),
        grid_spec=pltpu.PrefetchScalarGridSpec(
            num_scalar_prefetch=2,
            grid=(n_pad // nb,),
            in_specs=[
                pl.BlockSpec((nb, P1, D), lambda n, xl, yl: (n, 0, 0)),
                pl.BlockSpec((nb, D, p2_pad), lambda n, xl, yl: (n, 0, 0)),
            ],
            out_specs=[
                pl.BlockSpec((nb, P1, 1), lambda n, xl, yl: (n, 0, 0)),
                pl.BlockSpec((nb, p2_pad), lambda n, xl, yl: (n, 0)),
            ],
        ),
        compiler_params=pltpu.CompilerParams(
            dimension_semantics=("parallel",)),   # independent batches -> v7x 2-TC sharding
    )(xl_p, yl_p, xf, yf)

    cham_x = dx[:N, :, 0]     # (N, P1): min_j d(x_i, y_j), 0 on padded x points
    cham_y = dy[:N, :P2]      # (N, P2): min_i d(x_i, y_j), 0 on padded y points

    if point_reduction is None:
        if single_directional:
            return cham_x, None
        return (cham_x, cham_y), None

    cx = cham_x.sum(axis=1)
    cy = cham_y.sum(axis=1)
    if point_reduction == "mean":
        cx = cx / jnp.maximum(x_lengths, 1).astype(cx.dtype)
        cy = cy / jnp.maximum(y_lengths, 1).astype(cy.dtype)
    if batch_reduction is not None:
        cx = cx.sum()
        cy = cy.sum()
        if batch_reduction == "mean":
            cx = cx / max(N, 1)
            cy = cy / max(N, 1)
    if single_directional:
        return cx, None
    return cx + cy, None


def _chamfer_ref(x, y, x_lengths, y_lengths):
    """Pure-JAX reference (default reductions: mean/mean, bidirectional, norm=2)."""
    N, P1, _ = x.shape
    P2 = y.shape[1]
    d = jnp.sum((x[:, :, None, :] - y[:, None, :, :]) ** 2, axis=-1)  # (N,P1,P2)
    col_ok = jnp.arange(P2)[None, None, :] < y_lengths[:, None, None]
    row_ok = jnp.arange(P1)[None, :, None] < x_lengths[:, None, None]
    cham_x = jnp.min(jnp.where(col_ok, d, 1e30), axis=2)
    cham_x = jnp.where(jnp.arange(P1)[None, :] < x_lengths[:, None], cham_x, 0.0)
    cham_y = jnp.min(jnp.where(row_ok, d, 1e30), axis=1)
    cham_y = jnp.where(jnp.arange(P2)[None, :] < y_lengths[:, None], cham_y, 0.0)
    cx = cham_x.sum(1) / jnp.maximum(x_lengths, 1)
    cy = cham_y.sum(1) / jnp.maximum(y_lengths, 1)
    return cx.sum() / N + cy.sum() / N


if __name__ == "__main__":
    key = jax.random.PRNGKey(0)
    kx, ky = jax.random.split(key)
    N, P1, P2, D = 2, 128, 64, 3
    x = jax.random.normal(kx, (N, P1, D), dtype=jnp.float32)
    y = jax.random.normal(ky, (N, P2, D), dtype=jnp.float32)
    x_lengths = jnp.array([P1, 96], dtype=jnp.int32)   # heterogeneous clouds
    y_lengths = jnp.array([P2, 48], dtype=jnp.int32)

    loss, loss_normals = chamfer_loss(x, y, x_lengths, y_lengths)
    loss = jax.block_until_ready(loss)

    ref = _chamfer_ref(x, y, x_lengths, y_lengths)
    assert loss_normals is None
    assert np.allclose(np.asarray(loss), np.asarray(ref), rtol=1e-3, atol=1e-3), (
        float(loss), float(ref))
    print("KERNEL_OK")
</pallas_src>

<mosaic_0001>
module attributes {stable_mosaic.version = 11 : i64} {
  func.func @_chamfer_kernel(%arg0: i32, %arg1: memref<2xi32, #tpu.memory_space<smem>>, %arg2: memref<2xi32, #tpu.memory_space<smem>>, %arg3: memref<2x128x3xf32, #tpu.memory_space<vmem>>, %arg4: memref<2x3x64xf32, #tpu.memory_space<vmem>>, %arg5: memref<2x128x1xf32, #tpu.memory_space<vmem>>, %arg6: memref<2x64xf32, #tpu.memory_space<vmem>>) attributes {dimension_semantics = [#tpu.dimension_semantics<parallel>], iteration_bounds = array<i64: 1>, scalar_prefetch = 2 : i64, scratch_operands = 0 : i64, tpu.core_type = #tpu.core_type<tc>, window_params = [{transform_indices = @transform_0, window_bounds = array<i64: 2, 128, 3>}, {transform_indices = @transform_1, window_bounds = array<i64: 2, 3, 64>}, {transform_indices = @transform_2, window_bounds = array<i64: 2, 128, 1>}, {transform_indices = @transform_3, window_bounds = array<i64: 2, 64>}]} {
    %c2_i32 = arith.constant 2 : i32
    %0 = arith.muli %arg0, %c2_i32 : i32
    %c0_i32 = arith.constant 0 : i32
    %1 = arith.addi %0, %c0_i32 : i32
    %2 = arith.index_cast %1 : i32 to index
    %3 = memref.load %arg1[%2] : memref<2xi32, #tpu.memory_space<smem>>
    %c2_i32_0 = arith.constant 2 : i32
    %4 = arith.muli %arg0, %c2_i32_0 : i32
    %c0_i32_1 = arith.constant 0 : i32
    %5 = arith.addi %4, %c0_i32_1 : i32
    %6 = arith.index_cast %5 : i32 to index
    %7 = memref.load %arg2[%6] : memref<2xi32, #tpu.memory_space<smem>>
    %c0 = arith.constant 0 : index
    %c0_2 = arith.constant 0 : index
    %c0_3 = arith.constant 0 : index
    %8 = vector.load %arg3[%c0, %c0_2, %c0_3] : memref<2x128x3xf32, #tpu.memory_space<vmem>>, vector<1x128x1xf32>
    %9 = vector.shape_cast %8 : vector<1x128x1xf32> to vector<128x1xf32>
    %c0_4 = arith.constant 0 : index
    %c0_5 = arith.constant 0 : index
    %c1 = arith.constant 1 : index
    %10 = vector.load %arg3[%c0_4, %c0_5, %c1] : memref<2x128x3xf32, #tpu.memory_space<vmem>>, vector<1x128x1xf32>
    %11 = vector.shape_cast %10 : vector<1x128x1xf32> to vector<128x1xf32>
    %c0_6 = arith.constant 0 : index
    %c0_7 = arith.constant 0 : index
    %c2 = arith.constant 2 : index
    %12 = vector.load %arg3[%c0_6, %c0_7, %c2] : memref<2x128x3xf32, #tpu.memory_space<vmem>>, vector<1x128x1xf32>
    %13 = vector.shape_cast %12 : vector<1x128x1xf32> to vector<128x1xf32>
    %14 = tpu.iota {dimensions = array<i32: 0>} : vector<128x1xi32>
    %15 = vector.broadcast %3 : i32 to vector<128x1xi32>
    %16 = arith.cmpi slt, %14, %15 : vector<128x1xi32>
    %cst = arith.constant 1.000000e+30 : f32
    %17 = vector.broadcast %cst : f32 to vector<128x1xf32>
    %c0_8 = arith.constant 0 : index
    %c0_9 = arith.constant 0 : index
    %c0_10 = arith.constant 0 : index
    %18 = vector.load %arg4[%c0_8, %c0_9, %c0_10] : memref<2x3x64xf32, #tpu.memory_space<vmem>>, vector<1x3x64xf32>
    %19 = vector.shape_cast %18 : vector<1x3x64xf32> to vector<3x64xf32>
    %20 = tpu.iota {dimensions = array<i32: 1>} : vector<1x64xi32>
    %c0_i32_11 = arith.constant 0 : i32
    %21 = vector.broadcast %c0_i32_11 : i32 to vector<1x64xi32>
    %22 = arith.addi %20, %21 : vector<1x64xi32>
    %23 = vector.broadcast %7 : i32 to vector<1x64xi32>
    %24 = arith.cmpi slt, %22, %23 : vector<1x64xi32>
    %cst_12 = arith.constant 0.000000e+00 : f32
    %25 = vector.broadcast %cst_12 : f32 to vector<128x64xf32>
    %26 = vector.extract_strided_slice %19 {offsets = [0, 0], sizes = [1, 64], strides = [1, 1]} : vector<3x64xf32> to vector<1x64xf32>
    %27 = vector.broadcast %9 : vector<128x1xf32> to vector<128x64xf32>
    %28 = vector.broadcast %26 : vector<1x64xf32> to vector<128x64xf32>
    %29 = arith.subf %27, %28 : vector<128x64xf32>
    %30 = arith.mulf %29, %29 : vector<128x64xf32>
    %31 = arith.addf %25, %30 : vector<128x64xf32>
    %32 = vector.extract_strided_slice %19 {offsets = [1, 0], sizes = [1, 64], strides = [1, 1]} : vector<3x64xf32> to vector<1x64xf32>
    %33 = vector.broadcast %11 : vector<128x1xf32> to vector<128x64xf32>
    %34 = vector.broadcast %32 : vector<1x64xf32> to vector<128x64xf32>
    %35 = arith.subf %33, %34 : vector<128x64xf32>
    %36 = arith.mulf %35, %35 : vector<128x64xf32>
    %37 = arith.addf %31, %36 : vector<128x64xf32>
    %38 = vector.extract_strided_slice %19 {offsets = [2, 0], sizes = [1, 64], strides = [1, 1]} : vector<3x64xf32> to vector<1x64xf32>
    %39 = vector.broadcast %13 : vector<128x1xf32> to vector<128x64xf32>
    %40 = vector.broadcast %38 : vector<1x64xf32> to vector<128x64xf32>
    %41 = arith.subf %39, %40 : vector<128x64xf32>
    %42 = arith.mulf %41, %41 : vector<128x64xf32>
    %43 = arith.addf %37, %42 : vector<128x64xf32>
    %cst_13 = arith.constant 1.000000e+30 : f32
    %44 = vector.shape_cast %24 : vector<1x64xi1> to vector<1x64xi1>
    %45 = vector.broadcast %44 : vector<1x64xi1> to vector<128x64xi1>
    %46 = vector.broadcast %cst_13 : f32 to vector<128x64xf32>
    %47 = arith.select %45, %43, %46 : vector<128x64xi1>, vector<128x64xf32>
    %cst_14 = arith.constant dense<0x7F800000> : vector<128xf32>
    %48 = vector.multi_reduction <minimumf>, %47, %cst_14 [1] : vector<128x64xf32> to vector<128xf32>
    %49 = vector.shape_cast %48 : vector<128xf32> to vector<128x1xf32>
    %50 = arith.minimumf %17, %49 : vector<128x1xf32>
    %cst_15 = arith.constant 1.000000e+30 : f32
    %51 = vector.shape_cast %16 : vector<128x1xi1> to vector<128x1xi1>
    %52 = vector.broadcast %51 : vector<128x1xi1> to vector<128x64xi1>
    %53 = vector.broadcast %cst_15 : f32 to vector<128x64xf32>
    %54 = arith.select %52, %43, %53 : vector<128x64xi1>, vector<128x64xf32>
    %cst_16 = arith.constant dense<0x7F800000> : vector<64xf32>
    %55 = vector.multi_reduction <minimumf>, %54, %cst_16 [0] : vector<128x64xf32> to vector<64xf32>
    %56 = vector.shape_cast %55 : vector<64xf32> to vector<1x64xf32>
    %c0_i32_17 = arith.constant 0 : i32
    %57 = arith.cmpi sgt, %3, %c0_i32_17 : i32
    %58 = vector.broadcast %57 : i1 to vector<1x64xi1>
    %59 = arith.andi %24, %58 : vector<1x64xi1>
    %cst_18 = arith.constant 0.000000e+00 : f32
    %60 = vector.broadcast %cst_18 : f32 to vector<1x64xf32>
    %61 = arith.select %59, %56, %60 : vector<1x64xi1>, vector<1x64xf32>
    %c0_19 = arith.constant 0 : index
    %c0_20 = arith.constant 0 : index
    %62 = vector.load %arg6[%c0_19, %c0_20] : memref<2x64xf32, #tpu.memory_space<vmem>>, vector<1x64xf32>
    tpu.vector_store %arg6[%c0_19, %c0_20], %61 {strides = array<i32>} : memref<2x64xf32, #tpu.memory_space<vmem>>, vector<1x64xf32>,
    %c0_i32_21 = arith.constant 0 : i32
    %63 = arith.cmpi sgt, %7, %c0_i32_21 : i32
    %64 = vector.broadcast %63 : i1 to vector<128x1xi1>
    %65 = arith.andi %16, %64 : vector<128x1xi1>
    %cst_22 = arith.constant 0.000000e+00 : f32
    %66 = vector.broadcast %cst_22 : f32 to vector<128x1xf32>
    %67 = arith.select %65, %50, %66 : vector<128x1xi1>, vector<128x1xf32>
    %c0_23 = arith.constant 0 : index
    %c0_24 = arith.constant 0 : index
    %c0_25 = arith.constant 0 : index
    %68 = vector.load %arg5[%c0_23, %c0_24, %c0_25] : memref<2x128x1xf32, #tpu.memory_space<vmem>>, vector<1x128x1xf32>
    %69 = vector.shape_cast %68 : vector<1x128x1xf32> to vector<128x1xf32>
    %70 = vector.shape_cast %67 : vector<128x1xf32> to vector<1x128x1xf32>
    tpu.vector_store %arg5[%c0_23, %c0_24, %c0_25], %70 {strides = array<i32>} : memref<2x128x1xf32, #tpu.memory_space<vmem>>, vector<1x128x1xf32>,
    %c2_i32_26 = arith.constant 2 : i32
    %71 = arith.muli %arg0, %c2_i32_26 : i32
    %c1_i32 = arith.constant 1 : i32
    %72 = arith.addi %71, %c1_i32 : i32
    %73 = arith.index_cast %72 : i32 to index
    %74 = memref.load %arg1[%73] : memref<2xi32, #tpu.memory_space<smem>>
    %c2_i32_27 = arith.constant 2 : i32
    %75 = arith.muli %arg0, %c2_i32_27 : i32
    %c1_i32_28 = arith.constant 1 : i32
    %76 = arith.addi %75, %c1_i32_28 : i32
    %77 = arith.index_cast %76 : i32 to index
    %78 = memref.load %arg2[%77] : memref<2xi32, #tpu.memory_space<smem>>
    %c1_29 = arith.constant 1 : index
    %c0_30 = arith.constant 0 : index
    %c0_31 = arith.constant 0 : index
    %79 = vector.load %arg3[%c1_29, %c0_30, %c0_31] : memref<2x128x3xf32, #tpu.memory_space<vmem>>, vector<1x128x1xf32>
    %80 = vector.shape_cast %79 : vector<1x128x1xf32> to vector<128x1xf32>
    %c1_32 = arith.constant 1 : index
    %c0_33 = arith.constant 0 : index
    %c1_34 = arith.constant 1 : index
    %81 = vector.load %arg3[%c1_32, %c0_33, %c1_34] : memref<2x128x3xf32, #tpu.memory_space<vmem>>, vector<1x128x1xf32>
    %82 = vector.shape_cast %81 : vector<1x128x1xf32> to vector<128x1xf32>
    %c1_35 = arith.constant 1 : index
    %c0_36 = arith.constant 0 : index
    %c2_37 = arith.constant 2 : index
    %83 = vector.load %arg3[%c1_35, %c0_36, %c2_37] : memref<2x128x3xf32, #tpu.memory_space<vmem>>, vector<1x128x1xf32>
    %84 = vector.shape_cast %83 : vector<1x128x1xf32> to vector<128x1xf32>
    %85 = tpu.iota {dimensions = array<i32: 0>} : vector<128x1xi32>
    %86 = vector.broadcast %74 : i32 to vector<128x1xi32>
    %87 = arith.cmpi slt, %85, %86 : vector<128x1xi32>
    %cst_38 = arith.constant 1.000000e+30 : f32
    %88 = vector.broadcast %cst_38 : f32 to vector<128x1xf32>
    %c1_39 = arith.constant 1 : index
    %c0_40 = arith.constant 0 : index
    %c0_41 = arith.constant 0 : index
    %89 = vector.load %arg4[%c1_39, %c0_40, %c0_41] : memref<2x3x64xf32, #tpu.memory_space<vmem>>, vector<1x3x64xf32>
    %90 = vector.shape_cast %89 : vector<1x3x64xf32> to vector<3x64xf32>
    %91 = tpu.iota {dimensions = array<i32: 1>} : vector<1x64xi32>
    %c0_i32_42 = arith.constant 0 : i32
    %92 = vector.broadcast %c0_i32_42 : i32 to vector<1x64xi32>
    %93 = arith.addi %91, %92 : vector<1x64xi32>
    %94 = vector.broadcast %78 : i32 to vector<1x64xi32>
    %95 = arith.cmpi slt, %93, %94 : vector<1x64xi32>
    %cst_43 = arith.constant 0.000000e+00 : f32
    %96 = vector.broadcast %cst_43 : f32 to vector<128x64xf32>
    %97 = vector.extract_strided_slice %90 {offsets = [0, 0], sizes = [1, 64], strides = [1, 1]} : vector<3x64xf32> to vector<1x64xf32>
    %98 = vector.broadcast %80 : vector<128x1xf32> to vector<128x64xf32>
    %99 = vector.broadcast %97 : vector<1x64xf32> to vector<128x64xf32>
    %100 = arith.subf %98, %99 : vector<128x64xf32>
    %101 = arith.mulf %100, %100 : vector<128x64xf32>
    %102 = arith.addf %96, %101 : vector<128x64xf32>
    %103 = vector.extract_strided_slice %90 {offsets = [1, 0], sizes = [1, 64], strides = [1, 1]} : vector<3x64xf32> to vector<1x64xf32>
    %104 = vector.broadcast %82 : vector<128x1xf32> to vector<128x64xf32>
    %105 = vector.broadcast %103 : vector<1x64xf32> to vector<128x64xf32>
    %106 = arith.subf %104, %105 : vector<128x64xf32>
    %107 = arith.mulf %106, %106 : vector<128x64xf32>
    %108 = arith.addf %102, %107 : vector<128x64xf32>
    %109 = vector.extract_strided_slice %90 {offsets = [2, 0], sizes = [1, 64], strides = [1, 1]} : vector<3x64xf32> to vector<1x64xf32>
    %110 = vector.broadcast %84 : vector<128x1xf32> to vector<128x64xf32>
    %111 = vector.broadcast %109 : vector<1x64xf32> to vector<128x64xf32>
    %112 = arith.subf %110, %111 : vector<128x64xf32>
    %113 = arith.mulf %112, %112 : vector<128x64xf32>
    %114 = arith.addf %108, %113 : vector<128x64xf32>
    %cst_44 = arith.constant 1.000000e+30 : f32
    %115 = vector.shape_cast %95 : vector<1x64xi1> to vector<1x64xi1>
    %116 = vector.broadcast %115 : vector<1x64xi1> to vector<128x64xi1>
    %117 = vector.broadcast %cst_44 : f32 to vector<128x64xf32>
    %118 = arith.select %116, %114, %117 : vector<128x64xi1>, vector<128x64xf32>
    %cst_45 = arith.constant dense<0x7F800000> : vector<128xf32>
    %119 = vector.multi_reduction <minimumf>, %118, %cst_45 [1] : vector<128x64xf32> to vector<128xf32>
    %120 = vector.shape_cast %119 : vector<128xf32> to vector<128x1xf32>
    %121 = arith.minimumf %88, %120 : vector<128x1xf32>
    %cst_46 = arith.constant 1.000000e+30 : f32
    %122 = vector.shape_cast %87 : vector<128x1xi1> to vector<128x1xi1>
    %123 = vector.broadcast %122 : vector<128x1xi1> to vector<128x64xi1>
    %124 = vector.broadcast %cst_46 : f32 to vector<128x64xf32>
    %125 = arith.select %123, %114, %124 : vector<128x64xi1>, vector<128x64xf32>
    %cst_47 = arith.constant dense<0x7F800000> : vector<64xf32>
    %126 = vector.multi_reduction <minimumf>, %125, %cst_47 [0] : vector<128x64xf32> to vector<64xf32>
    %127 = vector.shape_cast %126 : vector<64xf32> to vector<1x64xf32>
    %c0_i32_48 = arith.constant 0 : i32
    %128 = arith.cmpi sgt, %74, %c0_i32_48 : i32
    %129 = vector.broadcast %128 : i1 to vector<1x64xi1>
    %130 = arith.andi %95, %129 : vector<1x64xi1>
    %cst_49 = arith.constant 0.000000e+00 : f32
    %131 = vector.broadcast %cst_49 : f32 to vector<1x64xf32>
    %132 = arith.select %130, %127, %131 : vector<1x64xi1>, vector<1x64xf32>
    %c1_50 = arith.constant 1 : index
    %c0_51 = arith.constant 0 : index
    %133 = vector.load %arg6[%c1_50, %c0_51] : memref<2x64xf32, #tpu.memory_space<vmem>>, vector<1x64xf32>
    tpu.vector_store %arg6[%c1_50, %c0_51], %132 {strides = array<i32>} : memref<2x64xf32, #tpu.memory_space<vmem>>, vector<1x64xf32>,
    %c0_i32_52 = arith.constant 0 : i32
    %134 = arith.cmpi sgt, %78, %c0_i32_52 : i32
    %135 = vector.broadcast %134 : i1 to vector<128x1xi1>
    %136 = arith.andi %87, %135 : vector<128x1xi1>
    %cst_53 = arith.constant 0.000000e+00 : f32
    %137 = vector.broadcast %cst_53 : f32 to vector<128x1xf32>
    %138 = arith.select %136, %121, %137 : vector<128x1xi1>, vector<128x1xf32>
    %c1_54 = arith.constant 1 : index
    %c0_55 = arith.constant 0 : index
    %c0_56 = arith.constant 0 : index
    %139 = vector.load %arg5[%c1_54, %c0_55, %c0_56] : memref<2x128x1xf32, #tpu.memory_space<vmem>>, vector<1x128x1xf32>
    %140 = vector.shape_cast %139 : vector<1x128x1xf32> to vector<128x1xf32>
    %141 = vector.shape_cast %138 : vector<128x1xf32> to vector<1x128x1xf32>
    tpu.vector_store %arg5[%c1_54, %c0_55, %c0_56], %141 {strides = array<i32>} : memref<2x128x1xf32, #tpu.memory_space<vmem>>, vector<1x128x1xf32>,
    return
  }
  func.func @transform_0(%arg0: i32, %arg1: memref<2xi32, #tpu.memory_space<smem>>, %arg2: memref<2xi32, #tpu.memory_space<smem>>) -> (i32, i32, i32) {
    %c0_i32 = arith.constant 0 : i32
    %c0_i32_0 = arith.constant 0 : i32
    %c0_i32_1 = arith.constant 0 : i32
    return %arg0, %c0_i32, %c0_i32_0 : i32, i32, i32
  }
  func.func @transform_1(%arg0: i32, %arg1: memref<2xi32, #tpu.memory_space<smem>>, %arg2: memref<2xi32, #tpu.memory_space<smem>>) -> (i32, i32, i32) {
    %c0_i32 = arith.constant 0 : i32
    %c0_i32_0 = arith.constant 0 : i32
    %c0_i32_1 = arith.constant 0 : i32
    return %arg0, %c0_i32, %c0_i32_0 : i32, i32, i32
  }
  func.func @transform_2(%arg0: i32, %arg1: memref<2xi32, #tpu.memory_space<smem>>, %arg2: memref<2xi32, #tpu.memory_space<smem>>) -> (i32, i32, i32) {
    %c0_i32 = arith.constant 0 : i32
    %c0_i32_0 = arith.constant 0 : i32
    %c0_i32_1 = arith.constant 0 : i32
    return %arg0, %c0_i32, %c0_i32_0 : i32, i32, i32
  }
  func.func @transform_3(%arg0: i32, %arg1: memref<2xi32, #tpu.memory_space<smem>>, %arg2: memref<2xi32, #tpu.memory_space<smem>>) -> (i32, i32) {
    %c0_i32 = arith.constant 0 : i32
    %c0_i32_0 = arith.constant 0 : i32
    return %arg0, %c0_i32 : i32, i32
  }
}

</mosaic_0001>

<llo_original>
// kernel: tpu_custom_call.1
$region0: #{tpu_custom_call.1}
  #allocation0 [shape = 'u32[]', space=smem, size = 0x4, offset = 0x4, fixed_abs, tag = 'smem constant byte address 0x4 - core index']
  #allocation1 [shape = 'u32[72,128]{1,0:T(1,128)}', space=vmem, size = 0x9000, scoped, tag = 'internal scratch']
  #allocation2 [shape = 's32[1]{0}', space=sflag, size = 0x4, scoped, tag = 'scoped memory for tpu_custom_call.1']
  #allocation3 [shape = 'u8[512]{0}', space=smem, size = 0x200, scoped, tag = 'prefetched SMEM operand 0']
  #allocation4 [shape = 'u8[512]{0}', space=smem, size = 0x200, scoped, tag = 'prefetched SMEM operand 1']
  %s0 = inlined_call_operand.vmem [shape: s32[2], index: 0, kind: input, shape index: {}]
  %s1 = inlined_call_operand.vmem [shape: s32[2], index: 1, kind: input, shape index: {}]
  %s2 = inlined_call_operand.vmem [shape: f32[2,128,3], index: 2, kind: input, shape index: {}]
  %s3 = inlined_call_operand.vmem [shape: f32[2,3,64], index: 3, kind: input, shape index: {}]
  %s4 = inlined_call_operand.vmem [shape: f32[2,128,1], index: 4, kind: output, shape index: {0}]
  %s5 = inlined_call_operand.hbm [shape: f32[2,64], index: 5, kind: output, shape index: {1}]
  %6 = xla_tuple %s4, %s5
  %s7 = sld [smem:[#allocation0]]
  $region26: #{tpu_custom_call.1} parent=0
    _
  %s9 = ssub.s32 1, %s7
  %s10 = scalar_select 0, %s9, %s7
  %s12 = sshll.u32 %s0, 4
  %s13 = int_to_ptr.vmem [resolvable:$true] %s12
  %15 = dma.vmem_to_smem %s13, 16, [#allocation3], [#allocation2]
  %s17 = sshll.u32 %s1, 4
  %s18 = int_to_ptr.vmem [resolvable:$true] %s17
  %20 = dma.vmem_to_smem %s18, 16, [#allocation4], [#allocation2]
  %22 = dma.done [#allocation2], 32
  %23 = sfence
  $region1: #{tpu_custom_call.1} parent=0
    #allocation5 [shape = 'u8[1024]{0}', space=vmem, size = 0x400, scoped, tag = 'output window, operand 1, single buffered']
    #allocation6 [shape = 's32[1]{0}', space=sflag, size = 0x4, scoped, tag = 'scoped memory for tpu_custom_call.1']
    %24 = vsyncpa [#allocation6], 0
    // Predicated region
    $region2: #{tpu_custom_call.1} parent=1 // pred_check
      _
    $region3: #{tpu_custom_call.1} parent=1 // pred_check_branch
      %26 = sbr.rel (0) target = $region5
    $region4: #{tpu_custom_call.1} parent=1 // pred_region
      _
    $region5: #{tpu_custom_call.1} parent=1 // pred_fallthru
      _
    // Predicated region
    $region6: #{tpu_custom_call.1} parent=1 // pred_check
      _
    $region7: #{tpu_custom_call.1} parent=1 // pred_check_branch
      %28 = sbr.rel (0) target = $region9
    $region8: #{tpu_custom_call.1} parent=1 // pred_region
      _
    $region9: #{tpu_custom_call.1} parent=1 // pred_fallthru
      _
    %s29 = smul.u32 0, 2
    %s30 = sld [smem:[#allocation3 + %s29]]
    %s31 = sld [smem:[#allocation4 + %s29]]
    %v32 = vld [vmem:[%s2] sm:$0xff]
    %v33 = vld [vmem:[%s2 + $0x8] sm:$0xff]
    %v34 = vld [vmem:[%s2 + $0x10] sm:$0xff]
    %v35 = vld [vmem:[%s2 + $0x18] sm:$0xff]
    %v36 = vld [vmem:[%s2 + $0x20] sm:$0xff]
    %v37 = vld [vmem:[%s2 + $0x28] sm:$0xff]
    %v38 = vld [vmem:[%s2 + $0x30] sm:$0xff]
    %v39 = vld [vmem:[%s2 + $0x38] sm:$0xff]
    %v40 = vld [vmem:[%s2 + $0x40] sm:$0xff]
    %v41 = vld [vmem:[%s2 + $0x48] sm:$0xff]
    %v42 = vld [vmem:[%s2 + $0x50] sm:$0xff]
    %v43 = vld [vmem:[%s2 + $0x58] sm:$0xff]
    %v44 = vld [vmem:[%s2 + $0x60] sm:$0xff]
    %v45 = vld [vmem:[%s2 + $0x68] sm:$0xff]
    %v46 = vld [vmem:[%s2 + $0x70] sm:$0xff]
    %v47 = vld [vmem:[%s2 + $0x78] sm:$0xff]
    %v48 = vlaneseq
    %v49 = vshrl.u32 %v48, 7
    %v50 = vadd.s32 %v49, 8
    %v51 = vadd.s32 %v49, 16
    %v52 = vadd.s32 %v49, 24
    %v53 = vadd.s32 %v49, 32
    %v54 = vadd.s32 %v49, 40
    %v55 = vadd.s32 %v49, 48
    %v56 = vadd.s32 %v49, 56
    %v57 = vadd.s32 %v49, 64
    %v58 = vadd.s32 %v49, 72
    %v59 = vadd.s32 %v49, 80
    %v60 = vadd.s32 %v49, 88
    %v61 = vadd.s32 %v49, 96
    %v62 = vadd.s32 %v49, 104
    %v63 = vadd.s32 %v49, 112
    %v64 = vadd.s32 %v49, 120
    %v65 = vstv %s30
    %vm66 = vcmp.lt.s32.totalorder %v49, %v65
    %vm67 = vcmp.lt.s32.totalorder %v50, %v65
    %vm68 = vcmp.lt.s32.totalorder %v51, %v65
    %vm69 = vcmp.lt.s32.totalorder %v52, %v65
    %vm70 = vcmp.lt.s32.totalorder %v53, %v65
    %vm71 = vcmp.lt.s32.totalorder %v54, %v65
    %vm72 = vcmp.lt.s32.totalorder %v55, %v65
    %vm73 = vcmp.lt.s32.totalorder %v56, %v65
    %vm74 = vcmp.lt.s32.totalorder %v57, %v65
    %vm75 = vcmp.lt.s32.totalorder %v58, %v65
    %vm76 = vcmp.lt.s32.totalorder %v59, %v65
    %vm77 = vcmp.lt.s32.totalorder %v60, %v65
    %vm78 = vcmp.lt.s32.totalorder %v61, %v65
    %vm79 = vcmp.lt.s32.totalorder %v62, %v65
    %vm80 = vcmp.lt.s32.totalorder %v63, %v65
    %vm81 = vcmp.lt.s32.totalorder %v64, %v65
    %v82 = vld [vmem:[%s3] sm:$0x7]
    %v83 = vlaneseq
    %v84 = vand.u32 %v83, 127
    %v85 = vstv %s31
    %vm86 = vcmp.lt.s32.totalorder %v84, %v85
    %88 = vset.pattern.permute.xlu0 0
    %89 = vperm.xlu0 %88, %v32
    %v90 = vpop.permute.xlu0 %89
    %93 = vset.pattern.permute.xlu0 0
    %94 = vperm.xlu0 %93, %v33
    %v95 = vpop.permute.xlu0 %94
    %98 = vset.pattern.permute.xlu0 0
    %99 = vperm.xlu0 %98, %v34
    %v100 = vpop.permute.xlu0 %99
    %103 = vset.pattern.permute.xlu0 0
    %104 = vperm.xlu0 %103, %v35
    %v105 = vpop.permute.xlu0 %104
    %108 = vset.pattern.permute.xlu0 0
    %109 = vperm.xlu0 %108, %v36
    %v110 = vpop.permute.xlu0 %109
    %113 = vset.pattern.permute.xlu0 0
    %114 = vperm.xlu0 %113, %v37
    %v115 = vpop.permute.xlu0 %114
    %118 = vset.pattern.permute.xlu0 0
    %119 = vperm.xlu0 %118, %v38
    %v120 = vpop.permute.xlu0 %119
    %123 = vset.pattern.permute.xlu0 0
    %124 = vperm.xlu0 %123, %v39
    %v125 = vpop.permute.xlu0 %124
    %128 = vset.pattern.permute.xlu0 0
    %129 = vperm.xlu0 %128, %v40
    %v130 = vpop.permute.xlu0 %129
    %133 = vset.pattern.permute.xlu0 0
    %134 = vperm.xlu0 %133, %v41
    %v135 = vpop.permute.xlu0 %134
    %138 = vset.pattern.permute.xlu0 0
    %139 = vperm.xlu0 %138, %v42
    %v140 = vpop.permute.xlu0 %139
    %143 = vset.pattern.permute.xlu0 0
    %144 = vperm.xlu0 %143, %v43
    %v145 = vpop.permute.xlu0 %144
    %148 = vset.pattern.permute.xlu0 0
    %149 = vperm.xlu0 %148, %v44
    %v150 = vpop.permute.xlu0 %149
    %153 = vset.pattern.permute.xlu0 0
    %154 = vperm.xlu0 %153, %v45
    %v155 = vpop.permute.xlu0 %154
    %158 = vset.pattern.permute.xlu0 0
    %159 = vperm.xlu0 %158, %v46
    %v160 = vpop.permute.xlu0 %159
    %163 = vset.pattern.permute.xlu0 0
    %164 = vperm.xlu0 %163, %v47
    %v165 = vpop.permute.xlu0 %164
    %v167 = vperm.slane %v82, 0
    %v168 = vsub.f32 %v90, %v167
    %v169 = vsub.f32 %v95, %v167
    %v170 = vsub.f32 %v100, %v167
    %v171 = vsub.f32 %v105, %v167
    %v172 = vsub.f32 %v110, %v167
    %v173 = vsub.f32 %v115, %v167
    %v174 = vsub.f32 %v120, %v167
    %v175 = vsub.f32 %v125, %v167
    %v176 = vsub.f32 %v130, %v167
    %v177 = vsub.f32 %v135, %v167
    %v178 = vsub.f32 %v140, %v167
    %v179 = vsub.f32 %v145, %v167
    %v180 = vsub.f32 %v150, %v167
    %v181 = vsub.f32 %v155, %v167
    %v182 = vsub.f32 %v160, %v167
    %v183 = vsub.f32 %v165, %v167
    %v184 = vmul.f32 %v168, %v168
    %v185 = vmul.f32 %v169, %v169
    %v186 = vmul.f32 %v170, %v170
    %v187 = vmul.f32 %v171, %v171
    %v188 = vmul.f32 %v172, %v172
    %v189 = vmul.f32 %v173, %v173
    %v190 = vmul.f32 %v174, %v174
    %v191 = vmul.f32 %v175, %v175
    %v192 = vmul.f32 %v176, %v176
    %v193 = vmul.f32 %v177, %v177
    %v194 = vmul.f32 %v178, %v178
    %v195 = vmul.f32 %v179, %v179
    %v196 = vmul.f32 %v180, %v180
    %v197 = vmul.f32 %v181, %v181
    %v198 = vmul.f32 %v182, %v182
    %v199 = vmul.f32 %v183, %v183
    %v200 = vadd.f32 %v184, 0.0
    %v201 = vadd.f32 %v185, 0.0
    %v202 = vadd.f32 %v186, 0.0
    %v203 = vadd.f32 %v187, 0.0
    %v204 = vadd.f32 %v188, 0.0
    %v205 = vadd.f32 %v189, 0.0
    %v206 = vadd.f32 %v190, 0.0
    %v207 = vadd.f32 %v191, 0.0
    %v208 = vadd.f32 %v192, 0.0
    %v209 = vadd.f32 %v193, 0.0
    %v210 = vadd.f32 %v194, 0.0
    %v211 = vadd.f32 %v195, 0.0
    %v212 = vadd.f32 %v196, 0.0
    %v213 = vadd.f32 %v197, 0.0
    %v214 = vadd.f32 %v198, 0.0
    %v215 = vadd.f32 %v199, 0.0
    %216 = vset.pattern.permute.xlu0 1
    %217 = vperm.xlu0 %216, %v32
    %v218 = vpop.permute.xlu0 %217
    %220 = vset.pattern.permute.xlu0 1
    %221 = vperm.xlu0 %220, %v33
    %v222 = vpop.permute.xlu0 %221
    %224 = vset.pattern.permute.xlu0 1
    %225 = vperm.xlu0 %224, %v34
    %v226 = vpop.permute.xlu0 %225
    %228 = vset.pattern.permute.xlu0 1
    %229 = vperm.xlu0 %228, %v35
    %v230 = vpop.permute.xlu0 %229
    %232 = vset.pattern.permute.xlu0 1
    %233 = vperm.xlu0 %232, %v36
    %v234 = vpop.permute.xlu0 %233
    %236 = vset.pattern.permute.xlu0 1
    %237 = vperm.xlu0 %236, %v37
    %v238 = vpop.permute.xlu0 %237
    %240 = vset.pattern.permute.xlu0 1
    %241 = vperm.xlu0 %240, %v38
    %v242 = vpop.permute.xlu0 %241
    %244 = vset.pattern.permute.xlu0 1
    %245 = vperm.xlu0 %244, %v39
    %v246 = vpop.permute.xlu0 %245
    %248 = vset.pattern.permute.xlu0 1
    %249 = vperm.xlu0 %248, %v40
    %v250 = vpop.permute.xlu0 %249
    %252 = vset.pattern.permute.xlu0 1
    %253 = vperm.xlu0 %252, %v41
    %v254 = vpop.permute.xlu0 %253
    %256 = vset.pattern.permute.xlu0 1
    %257 = vperm.xlu0 %256, %v42
    %v258 = vpop.permute.xlu0 %257
    %260 = vset.pattern.permute.xlu0 1
    %261 = vperm.xlu0 %260, %v43
    %v262 = vpop.permute.xlu0 %261
    %264 = vset.pattern.permute.xlu0 1
    %265 = vperm.xlu0 %264, %v44
    %v266 = vpop.permute.xlu0 %265
    %268 = vset.pattern.permute.xlu0 1
    %269 = vperm.xlu0 %268, %v45
    %v270 = vpop.permute.xlu0 %269
    %272 = vset.pattern.permute.xlu0 1
    %273 = vperm.xlu0 %272, %v46
    %v274 = vpop.permute.xlu0 %273
    %276 = vset.pattern.permute.xlu0 1
    %277 = vperm.xlu0 %276, %v47
    %v278 = vpop.permute.xlu0 %277
    %v280 = vperm.slane %v82, 1
    %v281 = vsub.f32 %v218, %v280
    %v282 = vsub.f32 %v222, %v280
    %v283 = vsub.f32 %v226, %v280
    %v284 = vsub.f32 %v230, %v280
    %v285 = vsub.f32 %v234, %v280
    %v286 = vsub.f32 %v238, %v280
    %v287 = vsub.f32 %v242, %v280
    %v288 = vsub.f32 %v246, %v280
    %v289 = vsub.f32 %v250, %v280
    %v290 = vsub.f32 %v254, %v280
    %v291 = vsub.f32 %v258, %v280
    %v292 = vsub.f32 %v262, %v280
    %v293 = vsub.f32 %v266, %v280
    %v294 = vsub.f32 %v270, %v280
    %v295 = vsub.f32 %v274, %v280
    %v296 = vsub.f32 %v278, %v280
    %v297 = vmul.f32 %v281, %v281
    %v298 = vmul.f32 %v282, %v282
    %v299 = vmul.f32 %v283, %v283
    %v300 = vmul.f32 %v284, %v284
    %v301 = vmul.f32 %v285, %v285
    %v302 = vmul.f32 %v286, %v286
    %v303 = vmul.f32 %v287, %v287
    %v304 = vmul.f32 %v288, %v288
    %v305 = vmul.f32 %v289, %v289
    %v306 = vmul.f32 %v290, %v290
    %v307 = vmul.f32 %v291, %v291
    %v308 = vmul.f32 %v292, %v292
    %v309 = vmul.f32 %v293, %v293
    %v310 = vmul.f32 %v294, %v294
    %v311 = vmul.f32 %v295, %v295
    %v312 = vmul.f32 %v296, %v296
    %v313 = vadd.f32 %v200, %v297
    %v314 = vadd.f32 %v201, %v298
    %v315 = vadd.f32 %v202, %v299
    %v316 = vadd.f32 %v203, %v300
    %v317 = vadd.f32 %v204, %v301
    %v318 = vadd.f32 %v205, %v302
    %v319 = vadd.f32 %v206, %v303
    %v320 = vadd.f32 %v207, %v304
    %v321 = vadd.f32 %v208, %v305
    %v322 = vadd.f32 %v209, %v306
    %v323 = vadd.f32 %v210, %v307
    %v324 = vadd.f32 %v211, %v308
    %v325 = vadd.f32 %v212, %v309
    %v326 = vadd.f32 %v213, %v310
    %v327 = vadd.f32 %v214, %v311
    %v328 = vadd.f32 %v215, %v312
    %329 = vset.pattern.permute.xlu0 2
    %330 = vperm.xlu0 %329, %v32
    %v331 = vpop.permute.xlu0 %330
    %333 = vset.pattern.permute.xlu0 2
    %334 = vperm.xlu0 %333, %v33
    %v335 = vpop.permute.xlu0 %334
    %337 = vset.pattern.permute.xlu0 2
    %338 = vperm.xlu0 %337, %v34
    %v339 = vpop.permute.xlu0 %338
    %341 = vset.pattern.permute.xlu0 2
    %342 = vperm.xlu0 %341, %v35
    %v343 = vpop.permute.xlu0 %342
    %345 = vset.pattern.permute.xlu0 2
    %346 = vperm.xlu0 %345, %v36
    %v347 = vpop.permute.xlu0 %346
    %349 = vset.pattern.permute.xlu0 2
    %350 = vperm.xlu0 %349, %v37
    %v351 = vpop.permute.xlu0 %350
    %353 = vset.pattern.permute.xlu0 2
    %354 = vperm.xlu0 %353, %v38
    %v355 = vpop.permute.xlu0 %354
    %357 = vset.pattern.permute.xlu0 2
    %358 = vperm.xlu0 %357, %v39
    %v359 = vpop.permute.xlu0 %358
    %361 = vset.pattern.permute.xlu0 2
    %362 = vperm.xlu0 %361, %v40
    %v363 = vpop.permute.xlu0 %362
    %365 = vset.pattern.permute.xlu0 2
    %366 = vperm.xlu0 %365, %v41
    %v367 = vpop.permute.xlu0 %366
    %369 = vset.pattern.permute.xlu0 2
    %370 = vperm.xlu0 %369, %v42
    %v371 = vpop.permute.xlu0 %370
    %373 = vset.pattern.permute.xlu0 2
    %374 = vperm.xlu0 %373, %v43
    %v375 = vpop.permute.xlu0 %374
    %377 = vset.pattern.permute.xlu0 2
    %378 = vperm.xlu0 %377, %v44
    %v379 = vpop.permute.xlu0 %378
    %381 = vset.pattern.permute.xlu0 2
    %382 = vperm.xlu0 %381, %v45
    %v383 = vpop.permute.xlu0 %382
    %385 = vset.pattern.permute.xlu0 2
    %386 = vperm.xlu0 %385, %v46
    %v387 = vpop.permute.xlu0 %386
    %389 = vset.pattern.permute.xlu0 2
    %390 = vperm.xlu0 %389, %v47
    %v391 = vpop.permute.xlu0 %390
    %v393 = vperm.slane %v82, 2
    %v394 = vsub.f32 %v331, %v393
    %v395 = vsub.f32 %v335, %v393
    %v396 = vsub.f32 %v339, %v393
    %v397 = vsub.f32 %v343, %v393
    %v398 = vsub.f32 %v347, %v393
    %v399 = vsub.f32 %v351, %v393
    %v400 = vsub.f32 %v355, %v393
    %v401 = vsub.f32 %v359, %v393
    %v402 = vsub.f32 %v363, %v393
    %v403 = vsub.f32 %v367, %v393
    %v404 = vsub.f32 %v371, %v393
    %v405 = vsub.f32 %v375, %v393
    %v406 = vsub.f32 %v379, %v393
    %v407 = vsub.f32 %v383, %v393
    %v408 = vsub.f32 %v387, %v393
    %v409 = vsub.f32 %v391, %v393
    %v410 = vmul.f32 %v394, %v394
    %v411 = vmul.f32 %v395, %v395
    %v412 = vmul.f32 %v396, %v396
    %v413 = vmul.f32 %v397, %v397
    %v414 = vmul.f32 %v398, %v398
    %v415 = vmul.f32 %v399, %v399
    %v416 = vmul.f32 %v400, %v400
    %v417 = vmul.f32 %v401, %v401
    %v418 = vmul.f32 %v402, %v402
    %v419 = vmul.f32 %v403, %v403
    %v420 = vmul.f32 %v404, %v404
    %v421 = vmul.f32 %v405, %v405
    %v422 = vmul.f32 %v406, %v406
    %v423 = vmul.f32 %v407, %v407
    %v424 = vmul.f32 %v408, %v408
    %v425 = vmul.f32 %v409, %v409
    %v426 = vadd.f32 %v313, %v410
    %v427 = vadd.f32 %v314, %v411
    %v428 = vadd.f32 %v315, %v412
    %v429 = vadd.f32 %v316, %v413
    %v430 = vadd.f32 %v317, %v414
    %v431 = vadd.f32 %v318, %v415
    %v432 = vadd.f32 %v319, %v416
    %v433 = vadd.f32 %v320, %v417
    %v434 = vadd.f32 %v321, %v418
    %v435 = vadd.f32 %v322, %v419
    %v436 = vadd.f32 %v323, %v420
    %v437 = vadd.f32 %v324, %v421
    %v438 = vadd.f32 %v325, %v422
    %v439 = vadd.f32 %v326, %v423
    %v440 = vadd.f32 %v327, %v424
    %v441 = vadd.f32 %v328, %v425
    %v442 = vsel %vm86, 1, 0
    %vm443 = vcmp.eq.s32.totalorder %v442, 1
    %v444 = vsel %vm443, %v426, 1e+30
    %v445 = vsel %vm443, %v427, 1e+30
    %v446 = vsel %vm443, %v428, 1e+30
    %v447 = vsel %vm443, %v429, 1e+30
    %v448 = vsel %vm443, %v430, 1e+30
    %v449 = vsel %vm443, %v431, 1e+30
    %v450 = vsel %vm443, %v432, 1e+30
    %v451 = vsel %vm443, %v433, 1e+30
    %v452 = vsel %vm443, %v434, 1e+30
    %v453 = vsel %vm443, %v435, 1e+30
    %v454 = vsel %vm443, %v436, 1e+30
    %v455 = vsel %vm443, %v437, 1e+30
    %v456 = vsel %vm443, %v438, 1e+30
    %v457 = vsel %vm443, %v439, 1e+30
    %v458 = vsel %vm443, %v440, 1e+30
    %v459 = vsel %vm443, %v441, 1e+30
    %vm460 = vcmask 523264
    %v461 = vsel %vm460, %v444, inf
    %462 = vmin.xlane.f32.xlu0 %v461
    %v463 = vpop.xlane.xlu0 %462
    %v464 = vsel %vm460, %v445, inf
    %465 = vmin.xlane.f32.xlu0 %v464
    %v466 = vpop.xlane.xlu0 %465
    %v467 = vsel %vm460, %v446, inf
    %468 = vmin.xlane.f32.xlu0 %v467
    %v469 = vpop.xlane.xlu0 %468
    %v470 = vsel %vm460, %v447, inf
    %471 = vmin.xlane.f32.xlu0 %v470
    %v472 = vpop.xlane.xlu0 %471
    %v473 = vsel %vm460, %v448, inf
    %474 = vmin.xlane.f32.xlu0 %v473
    %v475 = vpop.xlane.xlu0 %474
    %v476 = vsel %vm460, %v449, inf
    %477 = vmin.xlane.f32.xlu0 %v476
    %v478 = vpop.xlane.xlu0 %477
    %v479 = vsel %vm460, %v450, inf
    %480 = vmin.xlane.f32.xlu0 %v479
    %v481 = vpop.xlane.xlu0 %480
    %v482 = vsel %vm460, %v451, inf
    %483 = vmin.xlane.f32.xlu0 %v482
    %v484 = vpop.xlane.xlu0 %483
    %v485 = vsel %vm460, %v452, inf
    %486 = vmin.xlane.f32.xlu0 %v485
    %v487 = vpop.xlane.xlu0 %486
    %v488 = vsel %vm460, %v453, inf
    %489 = vmin.xlane.f32.xlu0 %v488
    %v490 = vpop.xlane.xlu0 %489
    %v491 = vsel %vm460, %v454, inf
    %492 = vmin.xlane.f32.xlu0 %v491
    %v493 = vpop.xlane.xlu0 %492
    %v494 = vsel %vm460, %v455, inf
    %495 = vmin.xlane.f32.xlu0 %v494
    %v496 = vpop.xlane.xlu0 %495
    %v497 = vsel %vm460, %v456, inf
    %498 = vmin.xlane.f32.xlu0 %v497
    %v499 = vpop.xlane.xlu0 %498
    %v500 = vsel %vm460, %v457, inf
    %501 = vmin.xlane.f32.xlu0 %v500
    %v502 = vpop.xlane.xlu0 %501
    %v503 = vsel %vm460, %v458, inf
    %504 = vmin.xlane.f32.xlu0 %v503
    %v505 = vpop.xlane.xlu0 %504
    %v506 = vsel %vm460, %v459, inf
    %507 = vmin.xlane.f32.xlu0 %v506
    %v508 = vpop.xlane.xlu0 %507
    %v509 = vmin.f32 %v463, 1e+30
    %v510 = vmin.f32 %v466, 1e+30
    %v511 = vmin.f32 %v469, 1e+30
    %v512 = vmin.f32 %v472, 1e+30
    %v513 = vmin.f32 %v475, 1e+30
    %v514 = vmin.f32 %v478, 1e+30
    %v515 = vmin.f32 %v481, 1e+30
    %v516 = vmin.f32 %v484, 1e+30
    %v517 = vmin.f32 %v487, 1e+30
    %v518 = vmin.f32 %v490, 1e+30
    %v519 = vmin.f32 %v493, 1e+30
    %v520 = vmin.f32 %v496, 1e+30
    %v521 = vmin.f32 %v499, 1e+30
    %v522 = vmin.f32 %v502, 1e+30
    %v523 = vmin.f32 %v505, 1e+30
    %v524 = vmin.f32 %v508, 1e+30
    %v525 = vsel %vm66, 1, 0
    %v526 = vsel %vm67, 1, 0
    %v527 = vsel %vm68, 1, 0
    %v528 = vsel %vm69, 1, 0
    %v529 = vsel %vm70, 1, 0
    %v530 = vsel %vm71, 1, 0
    %v531 = vsel %vm72, 1, 0
    %v532 = vsel %vm73, 1, 0
    %v533 = vsel %vm74, 1, 0
    %v534 = vsel %vm75, 1, 0
    %v535 = vsel %vm76, 1, 0
    %v536 = vsel %vm77, 1, 0
    %v537 = vsel %vm78, 1, 0
    %v538 = vsel %vm79, 1, 0
    %v539 = vsel %vm80, 1, 0
    %v540 = vsel %vm81, 1, 0
    %vm541 = vcmp.eq.s32.totalorder %v525, 1
    %vm542 = vcmp.eq.s32.totalorder %v526, 1
    %vm543 = vcmp.eq.s32.totalorder %v527, 1
    %vm544 = vcmp.eq.s32.totalorder %v528, 1
    %vm545 = vcmp.eq.s32.totalorder %v529, 1
    %vm546 = vcmp.eq.s32.totalorder %v530, 1
    %vm547 = vcmp.eq.s32.totalorder %v531, 1
    %vm548 = vcmp.eq.s32.totalorder %v532, 1
    %vm549 = vcmp.eq.s32.totalorder %v533, 1
    %vm550 = vcmp.eq.s32.totalorder %v534, 1
    %vm551 = vcmp.eq.s32.totalorder %v535, 1
    %vm552 = vcmp.eq.s32.totalorder %v536, 1
    %vm553 = vcmp.eq.s32.totalorder %v537, 1
    %vm554 = vcmp.eq.s32.totalorder %v538, 1
    %vm555 = vcmp.eq.s32.totalorder %v539, 1
    %vm556 = vcmp.eq.s32.totalorder %v540, 1
    %v557 = vsel %vm541, %v426, 1e+30
    %v558 = vsel %vm542, %v427, 1e+30
    %v559 = vsel %vm543, %v428, 1e+30
    %v560 = vsel %vm544, %v429, 1e+30
    %v561 = vsel %vm545, %v430, 1e+30
    %v562 = vsel %vm546, %v431, 1e+30
    %v563 = vsel %vm547, %v432, 1e+30
    %v564 = vsel %vm548, %v433, 1e+30
    %v565 = vsel %vm549, %v434, 1e+30
    %v566 = vsel %vm550, %v435, 1e+30
    %v567 = vsel %vm551, %v436, 1e+30
    %v568 = vsel %vm552, %v437, 1e+30
    %v569 = vsel %vm553, %v438, 1e+30
    %v570 = vsel %vm554, %v439, 1e+30
    %v571 = vsel %vm555, %v440, 1e+30
    %v572 = vsel %vm556, %v441, 1e+30
    %v573 = vsel %vm460, %v557, inf
    %v574 = vsel %vm460, %v558, inf
    %v575 = vsel %vm460, %v559, inf
    %v576 = vsel %vm460, %v560, inf
    %v577 = vsel %vm460, %v561, inf
    %v578 = vmin.f32 %v573, %v577
    %v579 = vsel %vm460, %v562, inf
    %v580 = vmin.f32 %v574, %v579
    %v581 = vsel %vm460, %v563, inf
    %v582 = vmin.f32 %v575, %v581
    %v583 = vsel %vm460, %v564, inf
    %v584 = vmin.f32 %v576, %v583
    %v585 = vsel %vm460, %v565, inf
    %v586 = vmin.f32 %v578, %v585
    %v587 = vsel %vm460, %v566, inf
    %v588 = vmin.f32 %v580, %v587
    %v589 = vsel %vm460, %v567, inf
    %v590 = vmin.f32 %v582, %v589
    %v591 = vsel %vm460, %v568, inf
    %v592 = vmin.f32 %v584, %v591
    %v593 = vsel %vm460, %v569, inf
    %v594 = vmin.f32 %v586, %v593
    %v595 = vsel %vm460, %v570, inf
    %v596 = vmin.f32 %v588, %v595
    %v597 = vsel %vm460, %v571, inf
    %v598 = vmin.f32 %v590, %v597
    %v599 = vsel %vm460, %v572, inf
    %v600 = vmin.f32 %v592, %v599
    %v601 = vmin.f32 %v594, %v596
    %v602 = vmin.f32 %v598, %v600
    %v603 = vmin.f32 %v601, %v602
    %v604 = vrot.slane %v603, 4
    %v605 = vmin.f32 %v603, %v604
    %v606 = vrot.slane %v605, 2
    %v607 = vmin.f32 %v605, %v606
    %v608 = vrot.slane %v607, 1
    %v609 = vmin.f32 %v607, %v608
    %p610 = scmp.gt.s32.totalorder %s30, 0
    %s611 = scalar_select %p610, 1, 0
    %v612 = vstv %s611
    %vm613 = vcmp.eq.s32.totalorder %v612, 1
    %vm614 = vmand %vm86, %vm613
    %v615 = vsel %vm614, %v609, 0.0
    %vm616 = vcmask 516096
    %617 = vst.msk [vmem:[#allocation5] sm:$0x1] %vm616, %v615
    %p618 = scmp.gt.s32.totalorder %s31, 0
    %s619 = scalar_select %p618, 1, 0
    %v620 = vstv %s619
    %vm621 = vcmp.eq.s32.totalorder %v620, 1
    %vm622 = vmand %vm66, %vm621
    %vm623 = vmand %vm67, %vm621
    %vm624 = vmand %vm68, %vm621
    %vm625 = vmand %vm69, %vm621
    %vm626 = vmand %vm70, %vm621
    %vm627 = vmand %vm71, %vm621
    %vm628 = vmand %vm72, %vm621
    %vm629 = vmand %vm73, %vm621
    %vm630 = vmand %vm74, %vm621
    %vm631 = vmand %vm75, %vm621
    %vm632 = vmand %vm76, %vm621
    %vm633 = vmand %vm77, %vm621
    %vm634 = vmand %vm78, %vm621
    %vm635 = vmand %vm79, %vm621
    %vm636 = vmand %vm80, %vm621
    %vm637 = vmand %vm81, %vm621
    %v638 = vsel %vm622, %v509, 0.0
    %v639 = vsel %vm623, %v510, 0.0
    %v640 = vsel %vm624, %v511, 0.0
    %v641 = vsel %vm625, %v512, 0.0
    %v642 = vsel %vm626, %v513, 0.0
    %v643 = vsel %vm627, %v514, 0.0
    %v644 = vsel %vm628, %v515, 0.0
    %v645 = vsel %vm629, %v516, 0.0
    %v646 = vsel %vm630, %v517, 0.0
    %v647 = vsel %vm631, %v518, 0.0
    %v648 = vsel %vm632, %v519, 0.0
    %v649 = vsel %vm633, %v520, 0.0
    %v650 = vsel %vm634, %v521, 0.0
    %v651 = vsel %vm635, %v522, 0.0
    %v652 = vsel %vm636, %v523, 0.0
    %v653 = vsel %vm637, %v524, 0.0
    %vm654 = vcmask 7168
    %655 = vst.msk [vmem:[%s4] sm:$0xff] %vm654, %v638
    %656 = vst.msk [vmem:[%s4 + $0x8] sm:$0xff] %vm654, %v639
    %657 = vst.msk [vmem:[%s4 + $0x10] sm:$0xff] %vm654, %v640
    %658 = vst.msk [vmem:[%s4 + $0x18] sm:$0xff] %vm654, %v641
    %659 = vst.msk [vmem:[%s4 + $0x20] sm:$0xff] %vm654, %v642
    %660 = vst.msk [vmem:[%s4 + $0x28] sm:$0xff] %vm654, %v643
    %661 = vst.msk [vmem:[%s4 + $0x30] sm:$0xff] %vm654, %v644
    %662 = vst.msk [vmem:[%s4 + $0x38] sm:$0xff] %vm654, %v645
    %663 = vst.msk [vmem:[%s4 + $0x40] sm:$0xff] %vm654, %v646
    %664 = vst.msk [vmem:[%s4 + $0x48] sm:$0xff] %vm654, %v647
    %665 = vst.msk [vmem:[%s4 + $0x50] sm:$0xff] %vm654, %v648
    %666 = vst.msk [vmem:[%s4 + $0x58] sm:$0xff] %vm654, %v649
    %667 = vst.msk [vmem:[%s4 + $0x60] sm:$0xff] %vm654, %v650
    %668 = vst.msk [vmem:[%s4 + $0x68] sm:$0xff] %vm654, %v651
    %669 = vst.msk [vmem:[%s4 + $0x70] sm:$0xff] %vm654, %v652
    %670 = vst.msk [vmem:[%s4 + $0x78] sm:$0xff] %vm654, %v653
    %s671 = sadd.s32 %s29, 1
    %s672 = sld [smem:[#allocation3 + %s671]]
    %s673 = sld [smem:[#allocation4 + %s671]]
    %s674 = scalar_lea.vmem %s2, 128
    %v675 = vld [vmem:[%s674] sm:$0xff]
    %v676 = vld [vmem:[%s674 + $0x8] sm:$0xff]
    %v677 = vld [vmem:[%s674 + $0x10] sm:$0xff]
    %v678 = vld [vmem:[%s674 + $0x18] sm:$0xff]
    %v679 = vld [vmem:[%s674 + $0x20] sm:$0xff]
    %v680 = vld [vmem:[%s674 + $0x28] sm:$0xff]
    %v681 = vld [vmem:[%s674 + $0x30] sm:$0xff]
    %v682 = vld [vmem:[%s674 + $0x38] sm:$0xff]
    %v683 = vld [vmem:[%s674 + $0x40] sm:$0xff]
    %v684 = vld [vmem:[%s674 + $0x48] sm:$0xff]
    %v685 = vld [vmem:[%s674 + $0x50] sm:$0xff]
    %v686 = vld [vmem:[%s674 + $0x58] sm:$0xff]
    %v687 = vld [vmem:[%s674 + $0x60] sm:$0xff]
    %v688 = vld [vmem:[%s674 + $0x68] sm:$0xff]
    %v689 = vld [vmem:[%s674 + $0x70] sm:$0xff]
    %v690 = vld [vmem:[%s674 + $0x78] sm:$0xff]
    %v691 = vstv %s672
    %vm692 = vcmp.lt.s32.totalorder %v49, %v691
    %vm693 = vcmp.lt.s32.totalorder %v50, %v691
    %vm694 = vcmp.lt.s32.totalorder %v51, %v691
    %vm695 = vcmp.lt.s32.totalorder %v52, %v691
    %vm696 = vcmp.lt.s32.totalorder %v53, %v691
    %vm697 = vcmp.lt.s32.totalorder %v54, %v691
    %vm698 = vcmp.lt.s32.totalorder %v55, %v691
    %vm699 = vcmp.lt.s32.totalorder %v56, %v691
    %vm700 = vcmp.lt.s32.totalorder %v57, %v691
    %vm701 = vcmp.lt.s32.totalorder %v58, %v691
    %vm702 = vcmp.lt.s32.totalorder %v59, %v691
    %vm703 = vcmp.lt.s32.totalorder %v60, %v691
    %vm704 = vcmp.lt.s32.totalorder %v61, %v691
    %vm705 = vcmp.lt.s32.totalorder %v62, %v691
    %vm706 = vcmp.lt.s32.totalorder %v63, %v691
    %vm707 = vcmp.lt.s32.totalorder %v64, %v691
    %s708 = scalar_lea.vmem %s3, 4
    %v709 = vld [vmem:[%s708] sm:$0x7]
    %v710 = vstv %s673
    %vm711 = vcmp.lt.s32.totalorder %v84, %v710
    %713 = vset.pattern.permute.xlu0 0
    %714 = vperm.xlu0 %713, %v675
    %v715 = vpop.permute.xlu0 %714
    %718 = vset.pattern.permute.xlu0 0
    %719 = vperm.xlu0 %718, %v676
    %v720 = vpop.permute.xlu0 %719
    %723 = vset.pattern.permute.xlu0 0
    %724 = vperm.xlu0 %723, %v677
    %v725 = vpop.permute.xlu0 %724
    %728 = vset.pattern.permute.xlu0 0
    %729 = vperm.xlu0 %728, %v678
    %v730 = vpop.permute.xlu0 %729
    %733 = vset.pattern.permute.xlu0 0
    %734 = vperm.xlu0 %733, %v679
    %v735 = vpop.permute.xlu0 %734
    %738 = vset.pattern.permute.xlu0 0
    %739 = vperm.xlu0 %738, %v680
    %v740 = vpop.permute.xlu0 %739
    %743 = vset.pattern.permute.xlu0 0
    %744 = vperm.xlu0 %743, %v681
    %v745 = vpop.permute.xlu0 %744
    %748 = vset.pattern.permute.xlu0 0
    %749 = vperm.xlu0 %748, %v682
    %v750 = vpop.permute.xlu0 %749
    %753 = vset.pattern.permute.xlu0 0
    %754 = vperm.xlu0 %753, %v683
    %v755 = vpop.permute.xlu0 %754
    %758 = vset.pattern.permute.xlu0 0
    %759 = vperm.xlu0 %758, %v684
    %v760 = vpop.permute.xlu0 %759
    %763 = vset.pattern.permute.xlu0 0
    %764 = vperm.xlu0 %763, %v685
    %v765 = vpop.permute.xlu0 %764
    %768 = vset.pattern.permute.xlu0 0
    %769 = vperm.xlu0 %768, %v686
    %v770 = vpop.permute.xlu0 %769
    %773 = vset.pattern.permute.xlu0 0
    %774 = vperm.xlu0 %773, %v687
    %v775 = vpop.permute.xlu0 %774
    %778 = vset.pattern.permute.xlu0 0
    %779 = vperm.xlu0 %778, %v688
    %v780 = vpop.permute.xlu0 %779
    %783 = vset.pattern.permute.xlu0 0
    %784 = vperm.xlu0 %783, %v689
    %v785 = vpop.permute.xlu0 %784
    %788 = vset.pattern.permute.xlu0 0
    %789 = vperm.xlu0 %788, %v690
    %v790 = vpop.permute.xlu0 %789
    %v792 = vperm.slane %v709, 0
    %v793 = vsub.f32 %v715, %v792
    %v794 = vsub.f32 %v720, %v792
    %v795 = vsub.f32 %v725, %v792
    %v796 = vsub.f32 %v730, %v792
    %v797 = vsub.f32 %v735, %v792
    %v798 = vsub.f32 %v740, %v792
    %v799 = vsub.f32 %v745, %v792
    %v800 = vsub.f32 %v750, %v792
    %v801 = vsub.f32 %v755, %v792
    %v802 = vsub.f32 %v760, %v792
    %v803 = vsub.f32 %v765, %v792
    %v804 = vsub.f32 %v770, %v792
    %v805 = vsub.f32 %v775, %v792
    %v806 = vsub.f32 %v780, %v792
    %v807 = vsub.f32 %v785, %v792
    %v808 = vsub.f32 %v790, %v792
    %v809 = vmul.f32 %v793, %v793
    %v810 = vmul.f32 %v794, %v794
    %v811 = vmul.f32 %v795, %v795
    %v812 = vmul.f32 %v796, %v796
    %v813 = vmul.f32 %v797, %v797
    %v814 = vmul.f32 %v798, %v798
    %v815 = vmul.f32 %v799, %v799
    %v816 = vmul.f32 %v800, %v800
    %v817 = vmul.f32 %v801, %v801
    %v818 = vmul.f32 %v802, %v802
    %v819 = vmul.f32 %v803, %v803
    %v820 = vmul.f32 %v804, %v804
    %v821 = vmul.f32 %v805, %v805
    %v822 = vmul.f32 %v806, %v806
    %v823 = vmul.f32 %v807, %v807
    %v824 = vmul.f32 %v808, %v808
    %v825 = vadd.f32 %v809, 0.0
    %v826 = vadd.f32 %v810, 0.0
    %v827 = vadd.f32 %v811, 0.0
    %v828 = vadd.f32 %v812, 0.0
    %v829 = vadd.f32 %v813, 0.0
    %v830 = vadd.f32 %v814, 0.0
    %v831 = vadd.f32 %v815, 0.0
    %v832 = vadd.f32 %v816, 0.0
    %v833 = vadd.f32 %v817, 0.0
    %v834 = vadd.f32 %v818, 0.0
    %v835 = vadd.f32 %v819, 0.0
    %v836 = vadd.f32 %v820, 0.0
    %v837 = vadd.f32 %v821, 0.0
    %v838 = vadd.f32 %v822, 0.0
    %v839 = vadd.f32 %v823, 0.0
    %v840 = vadd.f32 %v824, 0.0
    %841 = vset.pattern.permute.xlu0 1
    %842 = vperm.xlu0 %841, %v675
    %v843 = vpop.permute.xlu0 %842
    %845 = vset.pattern.permute.xlu0 1
    %846 = vperm.xlu0 %845, %v676
    %v847 = vpop.permute.xlu0 %846
    %849 = vset.pattern.permute.xlu0 1
    %850 = vperm.xlu0 %849, %v677
    %v851 = vpop.permute.xlu0 %850
    %853 = vset.pattern.permute.xlu0 1
    %854 = vperm.xlu0 %853, %v678
    %v855 = vpop.permute.xlu0 %854
    %857 = vset.pattern.permute.xlu0 1
    %858 = vperm.xlu0 %857, %v679
    %v859 = vpop.permute.xlu0 %858
    %861 = vset.pattern.permute.xlu0 1
    %862 = vperm.xlu0 %861, %v680
    %v863 = vpop.permute.xlu0 %862
    %865 = vset.pattern.permute.xlu0 1
    %866 = vperm.xlu0 %865, %v681
    %v867 = vpop.permute.xlu0 %866
    %869 = vset.pattern.permute.xlu0 1
    %870 = vperm.xlu0 %869, %v682
    %v871 = vpop.permute.xlu0 %870
    %873 = vset.pattern.permute.xlu0 1
    %874 = vperm.xlu0 %873, %v683
    %v875 = vpop.permute.xlu0 %874
    %877 = vset.pattern.permute.xlu0 1
    %878 = vperm.xlu0 %877, %v684
    %v879 = vpop.permute.xlu0 %878
    %881 = vset.pattern.permute.xlu0 1
    %882 = vperm.xlu0 %881, %v685
    %v883 = vpop.permute.xlu0 %882
    %885 = vset.pattern.permute.xlu0 1
    %886 = vperm.xlu0 %885, %v686
    %v887 = vpop.permute.xlu0 %886
    %889 = vset.pattern.permute.xlu0 1
    %890 = vperm.xlu0 %889, %v687
    %v891 = vpop.permute.xlu0 %890
    %893 = vset.pattern.permute.xlu0 1
    %894 = vperm.xlu0 %893, %v688
    %v895 = vpop.permute.xlu0 %894
    %897 = vset.pattern.permute.xlu0 1
    %898 = vperm.xlu0 %897, %v689
    %v899 = vpop.permute.xlu0 %898
    %901 = vset.pattern.permute.xlu0 1
    %902 = vperm.xlu0 %901, %v690
    %v903 = vpop.permute.xlu0 %902
    %v905 = vperm.slane %v709, 1
    %v906 = vsub.f32 %v843, %v905
    %v907 = vsub.f32 %v847, %v905
    %v908 = vsub.f32 %v851, %v905
    %v909 = vsub.f32 %v855, %v905
    %v910 = vsub.f32 %v859, %v905
    %v911 = vsub.f32 %v863, %v905
    %v912 = vsub.f32 %v867, %v905
    %v913 = vsub.f32 %v871, %v905
    %v914 = vsub.f32 %v875, %v905
    %v915 = vsub.f32 %v879, %v905
    %v916 = vsub.f32 %v883, %v905
    %v917 = vsub.f32 %v887, %v905
    %v918 = vsub.f32 %v891, %v905
    %v919 = vsub.f32 %v895, %v905
    %v920 = vsub.f32 %v899, %v905
    %v921 = vsub.f32 %v903, %v905
    %v922 = vmul.f32 %v906, %v906
    %v923 = vmul.f32 %v907, %v907
    %v924 = vmul.f32 %v908, %v908
    %v925 = vmul.f32 %v909, %v909
    %v926 = vmul.f32 %v910, %v910
    %v927 = vmul.f32 %v911, %v911
    %v928 = vmul.f32 %v912, %v912
    %v929 = vmul.f32 %v913, %v913
    %v930 = vmul.f32 %v914, %v914
    %v931 = vmul.f32 %v915, %v915
    %v932 = vmul.f32 %v916, %v916
    %v933 = vmul.f32 %v917, %v917
    %v934 = vmul.f32 %v918, %v918
    %v935 = vmul.f32 %v919, %v919
    %v936 = vmul.f32 %v920, %v920
    %v937 = vmul.f32 %v921, %v921
    %v938 = vadd.f32 %v825, %v922
    %v939 = vadd.f32 %v826, %v923
    %v940 = vadd.f32 %v827, %v924
    %v941 = vadd.f32 %v828, %v925
    %v942 = vadd.f32 %v829, %v926
    %v943 = vadd.f32 %v830, %v927
    %v944 = vadd.f32 %v831, %v928
    %v945 = vadd.f32 %v832, %v929
    %v946 = vadd.f32 %v833, %v930
    %v947 = vadd.f32 %v834, %v931
    %v948 = vadd.f32 %v835, %v932
    %v949 = vadd.f32 %v836, %v933
    %v950 = vadd.f32 %v837, %v934
    %v951 = vadd.f32 %v838, %v935
    %v952 = vadd.f32 %v839, %v936
    %v953 = vadd.f32 %v840, %v937
    %954 = vset.pattern.permute.xlu0 2
    %955 = vperm.xlu0 %954, %v675
    %v956 = vpop.permute.xlu0 %955
    %958 = vset.pattern.permute.xlu0 2
    %959 = vperm.xlu0 %958, %v676
    %v960 = vpop.permute.xlu0 %959
    %962 = vset.pattern.permute.xlu0 2
    %963 = vperm.xlu0 %962, %v677
    %v964 = vpop.permute.xlu0 %963
    %966 = vset.pattern.permute.xlu0 2
    %967 = vperm.xlu0 %966, %v678
    %v968 = vpop.permute.xlu0 %967
    %970 = vset.pattern.permute.xlu0 2
    %971 = vperm.xlu0 %970, %v679
    %v972 = vpop.permute.xlu0 %971
    %974 = vset.pattern.permute.xlu0 2
    %975 = vperm.xlu0 %974, %v680
    %v976 = vpop.permute.xlu0 %975
    %978 = vset.pattern.permute.xlu0 2
    %979 = vperm.xlu0 %978, %v681
    %v980 = vpop.permute.xlu0 %979
    %982 = vset.pattern.permute.xlu0 2
    %983 = vperm.xlu0 %982, %v682
    %v984 = vpop.permute.xlu0 %983
    %986 = vset.pattern.permute.xlu0 2
    %987 = vperm.xlu0 %986, %v683
    %v988 = vpop.permute.xlu0 %987
    %990 = vset.pattern.permute.xlu0 2
    %991 = vperm.xlu0 %990, %v684
    %v992 = vpop.permute.xlu0 %991
    %994 = vset.pattern.permute.xlu0 2
    %995 = vperm.xlu0 %994, %v685
    %v996 = vpop.permute.xlu0 %995
    %998 = vset.pattern.permute.xlu0 2
    %999 = vperm.xlu0 %998, %v686
    %v1000 = vpop.permute.xlu0 %999
    %1002 = vset.pattern.permute.xlu0 2
    %1003 = vperm.xlu0 %1002, %v687
    %v1004 = vpop.permute.xlu0 %1003
    %1006 = vset.pattern.permute.xlu0 2
    %1007 = vperm.xlu0 %1006, %v688
    %v1008 = vpop.permute.xlu0 %1007
    %1010 = vset.pattern.permute.xlu0 2
    %1011 = vperm.xlu0 %1010, %v689
    %v1012 = vpop.permute.xlu0 %1011
    %1014 = vset.pattern.permute.xlu0 2
    %1015 = vperm.xlu0 %1014, %v690
    %v1016 = vpop.permute.xlu0 %1015
    %v1018 = vperm.slane %v709, 2
    %v1019 = vsub.f32 %v956, %v1018
    %v1020 = vsub.f32 %v960, %v1018
    %v1021 = vsub.f32 %v964, %v1018
    %v1022 = vsub.f32 %v968, %v1018
    %v1023 = vsub.f32 %v972, %v1018
    %v1024 = vsub.f32 %v976, %v1018
    %v1025 = vsub.f32 %v980, %v1018
    %v1026 = vsub.f32 %v984, %v1018
    %v1027 = vsub.f32 %v988, %v1018
    %v1028 = vsub.f32 %v992, %v1018
    %v1029 = vsub.f32 %v996, %v1018
    %v1030 = vsub.f32 %v1000, %v1018
    %v1031 = vsub.f32 %v1004, %v1018
    %v1032 = vsub.f32 %v1008, %v1018
    %v1033 = vsub.f32 %v1012, %v1018
    %v1034 = vsub.f32 %v1016, %v1018
    %v1035 = vmul.f32 %v1019, %v1019
    %v1036 = vmul.f32 %v1020, %v1020
    %v1037 = vmul.f32 %v1021, %v1021
    %v1038 = vmul.f32 %v1022, %v1022
    %v1039 = vmul.f32 %v1023, %v1023
    %v1040 = vmul.f32 %v1024, %v1024
    %v1041 = vmul.f32 %v1025, %v1025
    %v1042 = vmul.f32 %v1026, %v1026
    %v1043 = vmul.f32 %v1027, %v1027
    %v1044 = vmul.f32 %v1028, %v1028
    %v1045 = vmul.f32 %v1029, %v1029
    %v1046 = vmul.f32 %v1030, %v1030
    %v1047 = vmul.f32 %v1031, %v1031
    %v1048 = vmul.f32 %v1032, %v1032
    %v1049 = vmul.f32 %v1033, %v1033
    %v1050 = vmul.f32 %v1034, %v1034
    %v1051 = vadd.f32 %v938, %v1035
    %v1052 = vadd.f32 %v939, %v1036
    %v1053 = vadd.f32 %v940, %v1037
    %v1054 = vadd.f32 %v941, %v1038
    %v1055 = vadd.f32 %v942, %v1039
    %v1056 = vadd.f32 %v943, %v1040
    %v1057 = vadd.f32 %v944, %v1041
    %v1058 = vadd.f32 %v945, %v1042
    %v1059 = vadd.f32 %v946, %v1043
    %v1060 = vadd.f32 %v947, %v1044
    %v1061 = vadd.f32 %v948, %v1045
    %v1062 = vadd.f32 %v949, %v1046
    %v1063 = vadd.f32 %v950, %v1047
    %v1064 = vadd.f32 %v951, %v1048
    %v1065 = vadd.f32 %v952, %v1049
    %v1066 = vadd.f32 %v953, %v1050
    %v1067 = vsel %vm711, 1, 0
    %vm1068 = vcmp.eq.s32.totalorder %v1067, 1
    %v1069 = vsel %vm1068, %v1051, 1e+30
    %v1070 = vsel %vm1068, %v1052, 1e+30
    %v1071 = vsel %vm1068, %v1053, 1e+30
    %v1072 = vsel %vm1068, %v1054, 1e+30
    %v1073 = vsel %vm1068, %v1055, 1e+30
    %v1074 = vsel %vm1068, %v1056, 1e+30
    %v1075 = vsel %vm1068, %v1057, 1e+30
    %v1076 = vsel %vm1068, %v1058, 1e+30
    %v1077 = vsel %vm1068, %v1059, 1e+30
    %v1078 = vsel %vm1068, %v1060, 1e+30
    %v1079 = vsel %vm1068, %v1061, 1e+30
    %v1080 = vsel %vm1068, %v1062, 1e+30
    %v1081 = vsel %vm1068, %v1063, 1e+30
    %v1082 = vsel %vm1068, %v1064, 1e+30
    %v1083 = vsel %vm1068, %v1065, 1e+30
    %v1084 = vsel %vm1068, %v1066, 1e+30
    %v1085 = vsel %vm460, %v1069, inf
    %1086 = vmin.xlane.f32.xlu0 %v1085
    %v1087 = vpop.xlane.xlu0 %1086
    %v1088 = vsel %vm460, %v1070, inf
    %1089 = vmin.xlane.f32.xlu0 %v1088
    %v1090 = vpop.xlane.xlu0 %1089
    %v1091 = vsel %vm460, %v1071, inf
    %1092 = vmin.xlane.f32.xlu0 %v1091
    %v1093 = vpop.xlane.xlu0 %1092
    %v1094 = vsel %vm460, %v1072, inf
    %1095 = vmin.xlane.f32.xlu0 %v1094
    %v1096 = vpop.xlane.xlu0 %1095
    %v1097 = vsel %vm460, %v1073, inf
    %1098 = vmin.xlane.f32.xlu0 %v1097
    %v1099 = vpop.xlane.xlu0 %1098
    %v1100 = vsel %vm460, %v1074, inf
    %1101 = vmin.xlane.f32.xlu0 %v1100
    %v1102 = vpop.xlane.xlu0 %1101
    %v1103 = vsel %vm460, %v1075, inf
    %1104 = vmin.xlane.f32.xlu0 %v1103
    %v1105 = vpop.xlane.xlu0 %1104
    %v1106 = vsel %vm460, %v1076, inf
    %1107 = vmin.xlane.f32.xlu0 %v1106
    %v1108 = vpop.xlane.xlu0 %1107
    %v1109 = vsel %vm460, %v1077, inf
    %1110 = vmin.xlane.f32.xlu0 %v1109
    %v1111 = vpop.xlane.xlu0 %1110
    %v1112 = vsel %vm460, %v1078, inf
    %1113 = vmin.xlane.f32.xlu0 %v1112
    %v1114 = vpop.xlane.xlu0 %1113
    %v1115 = vsel %vm460, %v1079, inf
    %1116 = vmin.xlane.f32.xlu0 %v1115
    %v1117 = vpop.xlane.xlu0 %1116
    %v1118 = vsel %vm460, %v1080, inf
    %1119 = vmin.xlane.f32.xlu0 %v1118
    %v1120 = vpop.xlane.xlu0 %1119
    %v1121 = vsel %vm460, %v1081, inf
    %1122 = vmin.xlane.f32.xlu0 %v1121
    %v1123 = vpop.xlane.xlu0 %1122
    %v1124 = vsel %vm460, %v1082, inf
    %1125 = vmin.xlane.f32.xlu0 %v1124
    %v1126 = vpop.xlane.xlu0 %1125
    %v1127 = vsel %vm460, %v1083, inf
    %1128 = vmin.xlane.f32.xlu0 %v1127
    %v1129 = vpop.xlane.xlu0 %1128
    %v1130 = vsel %vm460, %v1084, inf
    %1131 = vmin.xlane.f32.xlu0 %v1130
    %v1132 = vpop.xlane.xlu0 %1131
    %v1133 = vmin.f32 %v1087, 1e+30
    %v1134 = vmin.f32 %v1090, 1e+30
    %v1135 = vmin.f32 %v1093, 1e+30
    %v1136 = vmin.f32 %v1096, 1e+30
    %v1137 = vmin.f32 %v1099, 1e+30
    %v1138 = vmin.f32 %v1102, 1e+30
    %v1139 = vmin.f32 %v1105, 1e+30
    %v1140 = vmin.f32 %v1108, 1e+30
    %v1141 = vmin.f32 %v1111, 1e+30
    %v1142 = vmin.f32 %v1114, 1e+30
    %v1143 = vmin.f32 %v1117, 1e+30
    %v1144 = vmin.f32 %v1120, 1e+30
    %v1145 = vmin.f32 %v1123, 1e+30
    %v1146 = vmin.f32 %v1126, 1e+30
    %v1147 = vmin.f32 %v1129, 1e+30
    %v1148 = vmin.f32 %v1132, 1e+30
    %v1149 = vsel %vm692, 1, 0
    %v1150 = vsel %vm693, 1, 0
    %v1151 = vsel %vm694, 1, 0
    %v1152 = vsel %vm695, 1, 0
    %v1153 = vsel %vm696, 1, 0
    %v1154 = vsel %vm697, 1, 0
    %v1155 = vsel %vm698, 1, 0
    %v1156 = vsel %vm699, 1, 0
    %v1157 = vsel %vm700, 1, 0
    %v1158 = vsel %vm701, 1, 0
    %v1159 = vsel %vm702, 1, 0
    %v1160 = vsel %vm703, 1, 0
    %v1161 = vsel %vm704, 1, 0
    %v1162 = vsel %vm705, 1, 0
    %v1163 = vsel %vm706, 1, 0
    %v1164 = vsel %vm707, 1, 0
    %vm1165 = vcmp.eq.s32.totalorder %v1149, 1
    %vm1166 = vcmp.eq.s32.totalorder %v1150, 1
    %vm1167 = vcmp.eq.s32.totalorder %v1151, 1
    %vm1168 = vcmp.eq.s32.totalorder %v1152, 1
    %vm1169 = vcmp.eq.s32.totalorder %v1153, 1
    %vm1170 = vcmp.eq.s32.totalorder %v1154, 1
    %vm1171 = vcmp.eq.s32.totalorder %v1155, 1
    %vm1172 = vcmp.eq.s32.totalorder %v1156, 1
    %vm1173 = vcmp.eq.s32.totalorder %v1157, 1
    %vm1174 = vcmp.eq.s32.totalorder %v1158, 1
    %vm1175 = vcmp.eq.s32.totalorder %v1159, 1
    %vm1176 = vcmp.eq.s32.totalorder %v1160, 1
    %vm1177 = vcmp.eq.s32.totalorder %v1161, 1
    %vm1178 = vcmp.eq.s32.totalorder %v1162, 1
    %vm1179 = vcmp.eq.s32.totalorder %v1163, 1
    %vm1180 = vcmp.eq.s32.totalorder %v1164, 1
    %v1181 = vsel %vm1165, %v1051, 1e+30
    %v1182 = vsel %vm1166, %v1052, 1e+30
    %v1183 = vsel %vm1167, %v1053, 1e+30
    %v1184 = vsel %vm1168, %v1054, 1e+30
    %v1185 = vsel %vm1169, %v1055, 1e+30
    %v1186 = vsel %vm1170, %v1056, 1e+30
    %v1187 = vsel %vm1171, %v1057, 1e+30
    %v1188 = vsel %vm1172, %v1058, 1e+30
    %v1189 = vsel %vm1173, %v1059, 1e+30
    %v1190 = vsel %vm1174, %v1060, 1e+30
    %v1191 = vsel %vm1175, %v1061, 1e+30
    %v1192 = vsel %vm1176, %v1062, 1e+30
    %v1193 = vsel %vm1177, %v1063, 1e+30
    %v1194 = vsel %vm1178, %v1064, 1e+30
    %v1195 = vsel %vm1179, %v1065, 1e+30
    %v1196 = vsel %vm1180, %v1066, 1e+30
    %v1197 = vsel %vm460, %v1181, inf
    %v1198 = vsel %vm460, %v1182, inf
    %v1199 = vsel %vm460, %v1183, inf
    %v1200 = vsel %vm460, %v1184, inf
    %v1201 = vsel %vm460, %v1185, inf
    %v1202 = vmin.f32 %v1197, %v1201
    %v1203 = vsel %vm460, %v1186, inf
    %v1204 = vmin.f32 %v1198, %v1203
    %v1205 = vsel %vm460, %v1187, inf
    %v1206 = vmin.f32 %v1199, %v1205
    %v1207 = vsel %vm460, %v1188, inf
    %v1208 = vmin.f32 %v1200, %v1207
    %v1209 = vsel %vm460, %v1189, inf
    %v1210 = vmin.f32 %v1202, %v1209
    %v1211 = vsel %vm460, %v1190, inf
    %v1212 = vmin.f32 %v1204, %v1211
    %v1213 = vsel %vm460, %v1191, inf
    %v1214 = vmin.f32 %v1206, %v1213
    %v1215 = vsel %vm460, %v1192, inf
    %v1216 = vmin.f32 %v1208, %v1215
    %v1217 = vsel %vm460, %v1193, inf
    %v1218 = vmin.f32 %v1210, %v1217
    %v1219 = vsel %vm460, %v1194, inf
    %v1220 = vmin.f32 %v1212, %v1219
    %v1221 = vsel %vm460, %v1195, inf
    %v1222 = vmin.f32 %v1214, %v1221
    %v1223 = vsel %vm460, %v1196, inf
    %v1224 = vmin.f32 %v1216, %v1223
    %v1225 = vmin.f32 %v1218, %v1220
    %v1226 = vmin.f32 %v1222, %v1224
    %v1227 = vmin.f32 %v1225, %v1226
    %v1228 = vrot.slane %v1227, 4
    %v1229 = vmin.f32 %v1227, %v1228
    %v1230 = vrot.slane %v1229, 2
    %v1231 = vmin.f32 %v1229, %v1230
    %v1232 = vrot.slane %v1231, 1
    %v1233 = vmin.f32 %v1231, %v1232
    %p1234 = scmp.gt.s32.totalorder %s672, 0
    %s1235 = scalar_select %p1234, 1, 0
    %v1236 = vstv %s1235
    %vm1237 = vcmp.eq.s32.totalorder %v1236, 1
    %vm1238 = vmand %vm711, %vm1237
    %v1239 = vsel %vm1238, %v1233, 0.0
    %1240 = vst.msk [vmem:[#allocation5 + $0x1] sm:$0x1] %vm616, %v1239
    %p1241 = scmp.gt.s32.totalorder %s673, 0
    %s1242 = scalar_select %p1241, 1, 0
    %v1243 = vstv %s1242
    %vm1244 = vcmp.eq.s32.totalorder %v1243, 1
    %vm1245 = vmand %vm692, %vm1244
    %vm1246 = vmand %vm693, %vm1244
    %vm1247 = vmand %vm694, %vm1244
    %vm1248 = vmand %vm695, %vm1244
    %vm1249 = vmand %vm696, %vm1244
    %vm1250 = vmand %vm697, %vm1244
    %vm1251 = vmand %vm698, %vm1244
    %vm1252 = vmand %vm699, %vm1244
    %vm1253 = vmand %vm700, %vm1244
    %vm1254 = vmand %vm701, %vm1244
    %vm1255 = vmand %vm702, %vm1244
    %vm1256 = vmand %vm703, %vm1244
    %vm1257 = vmand %vm704, %vm1244
    %vm1258 = vmand %vm705, %vm1244
    %vm1259 = vmand %vm706, %vm1244
    %vm1260 = vmand %vm707, %vm1244
    %v1261 = vsel %vm1245, %v1133, 0.0
    %v1262 = vsel %vm1246, %v1134, 0.0
    %v1263 = vsel %vm1247, %v1135, 0.0
    %v1264 = vsel %vm1248, %v1136, 0.0
    %v1265 = vsel %vm1249, %v1137, 0.0
    %v1266 = vsel %vm1250, %v1138, 0.0
    %v1267 = vsel %vm1251, %v1139, 0.0
    %v1268 = vsel %vm1252, %v1140, 0.0
    %v1269 = vsel %vm1253, %v1141, 0.0
    %v1270 = vsel %vm1254, %v1142, 0.0
    %v1271 = vsel %vm1255, %v1143, 0.0
    %v1272 = vsel %vm1256, %v1144, 0.0
    %v1273 = vsel %vm1257, %v1145, 0.0
    %v1274 = vsel %vm1258, %v1146, 0.0
    %v1275 = vsel %vm1259, %v1147, 0.0
    %v1276 = vsel %vm1260, %v1148, 0.0
    %s1277 = scalar_lea.vmem %s4, 128
    %1278 = vst.msk [vmem:[%s1277] sm:$0xff] %vm654, %v1261
    %1279 = vst.msk [vmem:[%s1277 + $0x8] sm:$0xff] %vm654, %v1262
    %1280 = vst.msk [vmem:[%s1277 + $0x10] sm:$0xff] %vm654, %v1263
    %1281 = vst.msk [vmem:[%s1277 + $0x18] sm:$0xff] %vm654, %v1264
    %1282 = vst.msk [vmem:[%s1277 + $0x20] sm:$0xff] %vm654, %v1265
    %1283 = vst.msk [vmem:[%s1277 + $0x28] sm:$0xff] %vm654, %v1266
    %1284 = vst.msk [vmem:[%s1277 + $0x30] sm:$0xff] %vm654, %v1267
    %1285 = vst.msk [vmem:[%s1277 + $0x38] sm:$0xff] %vm654, %v1268
    %1286 = vst.msk [vmem:[%s1277 + $0x40] sm:$0xff] %vm654, %v1269
    %1287 = vst.msk [vmem:[%s1277 + $0x48] sm:$0xff] %vm654, %v1270
    %1288 = vst.msk [vmem:[%s1277 + $0x50] sm:$0xff] %vm654, %v1271
    %1289 = vst.msk [vmem:[%s1277 + $0x58] sm:$0xff] %vm654, %v1272
    %1290 = vst.msk [vmem:[%s1277 + $0x60] sm:$0xff] %vm654, %v1273
    %1291 = vst.msk [vmem:[%s1277 + $0x68] sm:$0xff] %vm654, %v1274
    %1292 = vst.msk [vmem:[%s1277 + $0x70] sm:$0xff] %vm654, %v1275
    %1293 = vst.msk [vmem:[%s1277 + $0x78] sm:$0xff] %vm654, %v1276
    // Predicated region
    $region10: #{tpu_custom_call.1} parent=1 // pred_check
      _
    $region11: #{tpu_custom_call.1} parent=1 // pred_check_branch
      %1295 = sbr.rel (0) target = $region13
    $region12: #{tpu_custom_call.1} parent=1 // pred_region
      _
    $region13: #{tpu_custom_call.1} parent=1 // pred_fallthru
      _
    // Predicated region
    $region14: #{tpu_custom_call.1} parent=1 // pred_check
      _
    $region15: #{tpu_custom_call.1} parent=1 // pred_check_branch
      %1297 = sbr.rel (0) target = $region17
    $region16: #{tpu_custom_call.1} parent=1 // pred_region
      %1299 = vsyncadd [#allocation6], 0
      %s1301 = sshll.u32 [#allocation5], 4
      %s1302 = int_to_ptr.vmem [resolvable:$true] %s1301
      %s1303 = sshll.u32 %s5, 4
      %s1304 = int_to_ptr.hbm [resolvable:$true] %s1303
      %1306 = dma.vmem_to_hbm [thread:$0]  %s1302, 32, %s1304, [#allocation6]
    $region17: #{tpu_custom_call.1} parent=1 // pred_fallthru
      _
    // Predicated region
    $region18: #{tpu_custom_call.1} parent=1 // pred_check
      _
    $region19: #{tpu_custom_call.1} parent=1 // pred_check_branch
      %1308 = sbr.rel (0) target = $region21
    $region20: #{tpu_custom_call.1} parent=1 // pred_region
      _
    $region21: #{tpu_custom_call.1} parent=1 // pred_fallthru
      _
    // Predicated region
    $region22: #{tpu_custom_call.1} parent=1 // pred_check
      _
    $region23: #{tpu_custom_call.1} parent=1 // pred_check_branch
      %1310 = sbr.rel (0) target = $region25
    $region24: #{tpu_custom_call.1} parent=1 // pred_region
      %1312 = dma.done [#allocation6], 32
    $region25: #{tpu_custom_call.1} parent=1 // pred_fallthru
      _
    %1313 = vsyncpa [#allocation6], 1

</llo_original>
